<compile_context>
chip_gen: v6e
topology: v6e:2x2x1
jax: 0.10.0
libtpu: 0.0.40
codegen_flags: <defaults>
</compile_context>

<pallas_src>
import jax
import jax.numpy as jnp
from jax.experimental import pallas as pl
from jax.experimental.pallas import tpu as pltpu


def _round_up(x, m):
    return ((x + m - 1) // m) * m


def mlp_kernel(x_ref, w1_ref, b1_ref, w2_ref, b2_ref, w3_ref, b3_ref, o_ref):
    # Layer 1: f32 x tile streamed from HBM, cast to bf16 in-register (no extra
    # HBM pass); bf16 x bf16 MXU matmul with f32 accumulation, f32 bias+ReLU.
    x = x_ref[...].astype(jnp.bfloat16)
    h1 = jnp.dot(x, w1_ref[...], preferred_element_type=jnp.float32)
    h1 = jnp.maximum(h1 + b1_ref[...], 0.0)
    # Layers 2/3: f32 end-to-end (VMEM-resident weights, negligible FLOPs).
    h2 = jnp.dot(h1, w2_ref[...], preferred_element_type=jnp.float32)
    h2 = jnp.maximum(h2 + b2_ref[...], 0.0)
    logits = jnp.dot(h2, w3_ref[...], preferred_element_type=jnp.float32)
    o_ref[...] = (logits + b3_ref[...]).astype(o_ref.dtype)


def _choose_batch_tiling(B, block_b):
    """Equal-split batch tiling.

    Tiles are multiples of 16 rows (bf16 sublane tile), at most `block_b` rows,
    and — when the batch is big enough — there are at least 4 tiles so both v7x
    TensorCores get >=2 pipelined steps each.  Padding is at most one tile's
    worth of rows (and in practice under one sublane group for large B).
    """
    B16 = _round_up(max(B, 1), 16)
    n_tiles = max(pl.cdiv(B16, block_b), min(4, B16 // 16))
    TB = _round_up(pl.cdiv(B16, n_tiles), 16)
    n_tiles = pl.cdiv(B16, TB)
    B_pad = n_tiles * TB
    return TB, B_pad, n_tiles


def _const_spec(shape):
    # Constant index_map => parameter stays resident in VMEM across all tiles.
    return pl.BlockSpec(shape, lambda i, _n=len(shape): (0,) * _n)


def fully_connected_mnist(x, params, *, block_b=1024):
    """x: (B, 1, 28, 28) float32 (NCHW). Returns logits (B, num_classes) f32."""
    w1, b1, w2, b2, w3, b3 = params
    B = x.shape[0]
    num_classes = w3.shape[1]

    x_flat = x.reshape(B, -1)            # (B, 784), like torch .view(B, -1); stays f32
    K = x_flat.shape[1]

    # One-time, tiny weight prep (not a pass over x): layer-1 weight in bf16.
    w1_bf16 = w1.astype(jnp.bfloat16)

    TB, B_pad, n_tiles = _choose_batch_tiling(B, block_b)
    if B_pad != B:
        x_flat = jnp.pad(x_flat, ((0, B_pad - B), (0, 0)))

    # Explicit scoped-VMEM budget: double-buffered x/out tiles + resident
    # weights + intermediates, with headroom; clamped so it fits every
    # generation's physical VMEM (v7x: 64 MiB per TensorCore).
    weight_bytes = K * 128 * 2 + 128 * 64 * 4 + 64 * num_classes * 4 \
        + (128 + 64 + num_classes) * 4
    tile_bytes = (2 * TB * K * 4                # double-buffered f32 x tile
                  + 2 * TB * num_classes * 4    # double-buffered logits tile
                  + TB * (128 + 64) * 4         # h1 / h2 intermediates
                  + weight_bytes)
    vmem_limit = int(min(max(32 * 1024 * 1024, 2 * tile_bytes), 56 * 1024 * 1024))

    # Advisory cost estimate so XLA schedules this call well vs. x's producer.
    flops = 2 * B_pad * (K * 128 + 128 * 64 + 64 * num_classes)
    bytes_accessed = B_pad * K * 4 + B_pad * num_classes * 4 + weight_bytes
    cost = pl.CostEstimate(flops=flops, transcendentals=0,
                           bytes_accessed=bytes_accessed)

    out = pl.pallas_call(
        mlp_kernel,
        out_shape=jax.ShapeDtypeStruct((B_pad, num_classes), jnp.float32),
        grid_spec=pltpu.PrefetchScalarGridSpec(
            num_scalar_prefetch=0,
            grid=(n_tiles,),
            in_specs=[
                # Streamed f32 x tile; last dim = full K (784) -> legal block,
                # no contraction-dim padding bytes on the HBM stream.
                pl.BlockSpec((TB, K), lambda i: (i, 0)),
                _const_spec(w1_bf16.shape), _const_spec(b1.shape),
                _const_spec(w2.shape), _const_spec(b2.shape),
                _const_spec(w3.shape), _const_spec(b3.shape),
            ],
            out_specs=pl.BlockSpec((TB, num_classes), lambda i: (i, 0)),
        ),
        compiler_params=pltpu.CompilerParams(
            dimension_semantics=("parallel",),   # batch tiles -> both TCs on v7x
            vmem_limit_bytes=vmem_limit,
        ),
        cost_estimate=cost,
    )(x_flat, w1_bf16, b1, w2, b2, w3, b3)

    return out if B_pad == B else out[:B]


def init_params(key, input_size=784, num_classes=10):
    """Deterministic synthetic init. Weights stored as (in_features, out_features)."""
    k1, k2, k3, k4, k5, k6 = jax.random.split(key, 6)
    scale = lambda fan_in: 1.0 / jnp.sqrt(jnp.float32(fan_in))
    w1 = jax.random.uniform(k1, (input_size, 128), jnp.float32, -1, 1) * scale(input_size)
    b1 = jax.random.uniform(k2, (1, 128), jnp.float32, -1, 1) * scale(input_size)
    w2 = jax.random.uniform(k3, (128, 64), jnp.float32, -1, 1) * scale(128)
    b2 = jax.random.uniform(k4, (1, 64), jnp.float32, -1, 1) * scale(128)
    w3 = jax.random.uniform(k5, (64, num_classes), jnp.float32, -1, 1) * scale(64)
    b3 = jax.random.uniform(k6, (1, num_classes), jnp.float32, -1, 1) * scale(64)
    return (w1, b1, w2, b2, w3, b3)


def _reference(x, params):
    """Pure-f32 reference, identical math to the PyTorch module."""
    w1, b1, w2, b2, w3, b3 = params
    h = x.reshape(x.shape[0], -1)
    h = jnp.maximum(h @ w1 + b1, 0.0)
    h = jnp.maximum(h @ w2 + b2, 0.0)
    return h @ w3 + b3


if __name__ == "__main__":
    key = jax.random.PRNGKey(0)
    k_x, k_p = jax.random.split(key)

    batch = 8
    x = jax.random.normal(k_x, (batch, 1, 28, 28), dtype=jnp.float32)  # NCHW
    params = init_params(k_p, input_size=784, num_classes=10)

    logits = fully_connected_mnist(x, params)
    jax.block_until_ready(logits)

    ref = _reference(x, params)
    assert logits.shape == (batch, 10)
    # Only layer 1 uses bf16 operands (f32 accumulation); layers 2-3 are f32.
    assert jnp.allclose(logits, ref, atol=2e-2, rtol=2e-2), "mismatch vs reference"

    print("KERNEL_OK")
</pallas_src>

<mosaic_0001>
module attributes {stable_mosaic.version = 11 : i64} {
  func.func @mlp_kernel(%arg0: i32, %arg1: memref<16x784xf32, #tpu.memory_space<vmem>>, %arg2: memref<784x128xbf16, #tpu.memory_space<vmem>>, %arg3: memref<1x128xf32, #tpu.memory_space<vmem>>, %arg4: memref<128x64xf32, #tpu.memory_space<vmem>>, %arg5: memref<1x64xf32, #tpu.memory_space<vmem>>, %arg6: memref<64x10xf32, #tpu.memory_space<vmem>>, %arg7: memref<1x10xf32, #tpu.memory_space<vmem>>, %arg8: memref<16x10xf32, #tpu.memory_space<vmem>>) attributes {dimension_semantics = [#tpu.dimension_semantics<parallel>], iteration_bounds = array<i64: 1>, scalar_prefetch = 0 : i64, scratch_operands = 0 : i64, tpu.core_type = #tpu.core_type<tc>, window_params = [{transform_indices = @transform_0, window_bounds = array<i64: 16, 784>}, {pipeline_mode = #tpu.pipeline_mode<synchronous>, transform_indices = @transform_1, window_bounds = array<i64: 784, 128>}, {pipeline_mode = #tpu.pipeline_mode<synchronous>, transform_indices = @transform_2, window_bounds = array<i64: 1, 128>}, {pipeline_mode = #tpu.pipeline_mode<synchronous>, transform_indices = @transform_3, window_bounds = array<i64: 128, 64>}, {pipeline_mode = #tpu.pipeline_mode<synchronous>, transform_indices = @transform_4, window_bounds = array<i64: 1, 64>}, {pipeline_mode = #tpu.pipeline_mode<synchronous>, transform_indices = @transform_5, window_bounds = array<i64: 64, 10>}, {pipeline_mode = #tpu.pipeline_mode<synchronous>, transform_indices = @transform_6, window_bounds = array<i64: 1, 10>}, {transform_indices = @transform_7, window_bounds = array<i64: 16, 10>}]} {
    %c0 = arith.constant 0 : index
    %c0_0 = arith.constant 0 : index
    %0 = vector.load %arg1[%c0, %c0_0] : memref<16x784xf32, #tpu.memory_space<vmem>>, vector<16x784xf32>
    %1 = arith.truncf %0 : vector<16x784xf32> to vector<16x784xbf16>
    %c0_1 = arith.constant 0 : index
    %c0_2 = arith.constant 0 : index
    %2 = vector.load %arg2[%c0_1, %c0_2] : memref<784x128xbf16, #tpu.memory_space<vmem>>, vector<784x128xbf16>
    %cst = arith.constant dense<0.000000e+00> : vector<16x128xf32>
    %3 = tpu.matmul %1, %2, %cst {dimension_numbers = #tpu.dot_dimension_numbers<[1], [0], [0], [1], [0, 0, 1, 1], [], []>} : vector<16x784xbf16>, vector<784x128xbf16>, vector<16x128xf32> -> vector<16x128xf32>
    %c0_3 = arith.constant 0 : index
    %c0_4 = arith.constant 0 : index
    %4 = vector.load %arg3[%c0_3, %c0_4] : memref<1x128xf32, #tpu.memory_space<vmem>>, vector<1x128xf32>
    %5 = vector.broadcast %4 : vector<1x128xf32> to vector<16x128xf32>
    %6 = arith.addf %3, %5 : vector<16x128xf32>
    %cst_5 = arith.constant 0.000000e+00 : f32
    %7 = vector.broadcast %cst_5 : f32 to vector<16x128xf32>
    %8 = arith.maximumf %6, %7 : vector<16x128xf32>
    %c0_6 = arith.constant 0 : index
    %c0_7 = arith.constant 0 : index
    %9 = vector.load %arg4[%c0_6, %c0_7] : memref<128x64xf32, #tpu.memory_space<vmem>>, vector<128x64xf32>
    %cst_8 = arith.constant dense<0.000000e+00> : vector<16x64xf32>
    %10 = tpu.matmul %8, %9, %cst_8 {dimension_numbers = #tpu.dot_dimension_numbers<[1], [0], [0], [1], [0, 0, 1, 1], [], []>} : vector<16x128xf32>, vector<128x64xf32>, vector<16x64xf32> -> vector<16x64xf32>
    %c0_9 = arith.constant 0 : index
    %c0_10 = arith.constant 0 : index
    %11 = vector.load %arg5[%c0_9, %c0_10] : memref<1x64xf32, #tpu.memory_space<vmem>>, vector<1x64xf32>
    %12 = vector.broadcast %11 : vector<1x64xf32> to vector<16x64xf32>
    %13 = arith.addf %10, %12 : vector<16x64xf32>
    %cst_11 = arith.constant 0.000000e+00 : f32
    %14 = vector.broadcast %cst_11 : f32 to vector<16x64xf32>
    %15 = arith.maximumf %13, %14 : vector<16x64xf32>
    %c0_12 = arith.constant 0 : index
    %c0_13 = arith.constant 0 : index
    %16 = vector.load %arg6[%c0_12, %c0_13] : memref<64x10xf32, #tpu.memory_space<vmem>>, vector<64x10xf32>
    %cst_14 = arith.constant dense<0.000000e+00> : vector<16x10xf32>
    %17 = tpu.matmul %15, %16, %cst_14 {dimension_numbers = #tpu.dot_dimension_numbers<[1], [0], [0], [1], [0, 0, 1, 1], [], []>} : vector<16x64xf32>, vector<64x10xf32>, vector<16x10xf32> -> vector<16x10xf32>
    %c0_15 = arith.constant 0 : index
    %c0_16 = arith.constant 0 : index
    %18 = vector.load %arg7[%c0_15, %c0_16] : memref<1x10xf32, #tpu.memory_space<vmem>>, vector<1x10xf32>
    %19 = vector.broadcast %18 : vector<1x10xf32> to vector<16x10xf32>
    %20 = arith.addf %17, %19 : vector<16x10xf32>
    %c0_17 = arith.constant 0 : index
    %c0_18 = arith.constant 0 : index
    %21 = vector.load %arg8[%c0_17, %c0_18] : memref<16x10xf32, #tpu.memory_space<vmem>>, vector<16x10xf32>
    tpu.vector_store %arg8[%c0_17, %c0_18], %20 {strides = array<i32>} : memref<16x10xf32, #tpu.memory_space<vmem>>, vector<16x10xf32>,
    return
  }
  func.func @transform_0(%arg0: i32) -> (i32, i32) {
    %c0_i32 = arith.constant 0 : i32
    %c0_i32_0 = arith.constant 0 : i32
    return %arg0, %c0_i32 : i32, i32
  }
  func.func @transform_1(%arg0: i32) -> (i32, i32) {
    %c0_i32 = arith.constant 0 : i32
    %c0_i32_0 = arith.constant 0 : i32
    %c0_i32_1 = arith.constant 0 : i32
    return %c0_i32, %c0_i32_0 : i32, i32
  }
  func.func @transform_2(%arg0: i32) -> (i32, i32) {
    %c0_i32 = arith.constant 0 : i32
    %c0_i32_0 = arith.constant 0 : i32
    %c0_i32_1 = arith.constant 0 : i32
    return %c0_i32, %c0_i32_0 : i32, i32
  }
  func.func @transform_3(%arg0: i32) -> (i32, i32) {
    %c0_i32 = arith.constant 0 : i32
    %c0_i32_0 = arith.constant 0 : i32
    %c0_i32_1 = arith.constant 0 : i32
    return %c0_i32, %c0_i32_0 : i32, i32
  }
  func.func @transform_4(%arg0: i32) -> (i32, i32) {
    %c0_i32 = arith.constant 0 : i32
    %c0_i32_0 = arith.constant 0 : i32
    %c0_i32_1 = arith.constant 0 : i32
    return %c0_i32, %c0_i32_0 : i32, i32
  }
  func.func @transform_5(%arg0: i32) -> (i32, i32) {
    %c0_i32 = arith.constant 0 : i32
    %c0_i32_0 = arith.constant 0 : i32
    %c0_i32_1 = arith.constant 0 : i32
    return %c0_i32, %c0_i32_0 : i32, i32
  }
  func.func @transform_6(%arg0: i32) -> (i32, i32) {
    %c0_i32 = arith.constant 0 : i32
    %c0_i32_0 = arith.constant 0 : i32
    %c0_i32_1 = arith.constant 0 : i32
    return %c0_i32, %c0_i32_0 : i32, i32
  }
  func.func @transform_7(%arg0: i32) -> (i32, i32) {
    %c0_i32 = arith.constant 0 : i32
    %c0_i32_0 = arith.constant 0 : i32
    return %arg0, %c0_i32 : i32, i32
  }
}

</mosaic_0001>

<llo_original>
// kernel: tpu_custom_call.1
$region0: #{tpu_custom_call.1}
  #allocation0 [shape = 'u32[]', space=smem, size = 0x4, offset = 0x4, fixed_abs, tag = 'smem constant byte address 0x4 - core index']
  #allocation1 [shape = 'u32[144,128]{1,0:T(1,128)}', space=vmem, size = 0x12000, scoped, tag = 'internal scratch']
  %s0 = inlined_call_operand.vmem [shape: f32[16,784], index: 0, kind: input, shape index: {}]
  %s1 = inlined_call_operand.hbm [shape: bf16[784,128], index: 1, kind: input, shape index: {}]
  %s2 = inlined_call_operand.vmem [shape: f32[1,128], index: 2, kind: input, shape index: {}]
  %s3 = inlined_call_operand.vmem [shape: f32[128,64], index: 3, kind: input, shape index: {}]
  %s4 = inlined_call_operand.vmem [shape: f32[1,64], index: 4, kind: input, shape index: {}]
  %s5 = inlined_call_operand.vmem [shape: f32[64,10], index: 5, kind: input, shape index: {}]
  %s6 = inlined_call_operand.vmem [shape: f32[1,10], index: 6, kind: input, shape index: {}]
  %s7 = inlined_call_operand.hbm [shape: f32[16,10], index: 7, kind: output, shape index: {}]
  %s8 = sld [smem:[#allocation0]]
  $region42: #{tpu_custom_call.1} parent=0
    _
  %s10 = ssub.s32 1, %s8
  %s11 = scalar_select 0, %s10, %s8
  $region1: #{tpu_custom_call.1} parent=0
    #allocation2 [shape = 'u8[200704]{0}', space=vmem, size = 0x31000, scoped, tag = 'input window, operand 1, single buffered']
    #allocation3 [shape = 's32[1]{0}', space=sflag, size = 0x4, scoped, tag = 'scoped memory for tpu_custom_call.1']
    #allocation4 [shape = 's32[1]{0}', space=sflag, size = 0x4, scoped, tag = 'scoped memory for tpu_custom_call.1']
    #allocation5 [shape = 'u8[8192]{0}', space=vmem, size = 0x2000, scoped, tag = 'output window, operand 0, single buffered']
    %12 = vsyncpa [#allocation3], 0
    %13 = vsyncpa [#allocation4], 0
    // Predicated region
    $region2: #{tpu_custom_call.1} parent=1 // pred_check
      _
    $region3: #{tpu_custom_call.1} parent=1 // pred_check_branch
      %15 = sbr.rel (0) target = $region5
    $region4: #{tpu_custom_call.1} parent=1 // pred_region
      _
    $region5: #{tpu_custom_call.1} parent=1 // pred_fallthru
      _
    // Predicated region
    $region6: #{tpu_custom_call.1} parent=1 // pred_check
      _
    $region7: #{tpu_custom_call.1} parent=1 // pred_check_branch
      %17 = sbr.rel (0) target = $region9
    $region8: #{tpu_custom_call.1} parent=1 // pred_region
      %s19 = ssub.s32 6272, 6272
      %20 = vsyncadd [#allocation3], %s19
      %s21 = sshll.u32 [#allocation2], 4
      %s22 = int_to_ptr.vmem [resolvable:$true] %s21
      %27 = dma.hbm_to_vmem [thread:$0]  %s1, 6272, %s22, [#allocation3], 64, 64, 4
    $region9: #{tpu_custom_call.1} parent=1 // pred_fallthru
      _
    // Predicated region
    $region10: #{tpu_custom_call.1} parent=1 // pred_check
      _
    $region11: #{tpu_custom_call.1} parent=1 // pred_check_branch
      %29 = sbr.rel (0) target = $region13
    $region12: #{tpu_custom_call.1} parent=1 // pred_region
      _
    $region13: #{tpu_custom_call.1} parent=1 // pred_fallthru
      _
    // Predicated region
    $region14: #{tpu_custom_call.1} parent=1 // pred_check
      _
    $region15: #{tpu_custom_call.1} parent=1 // pred_check_branch
      %31 = sbr.rel (0) target = $region17
    $region16: #{tpu_custom_call.1} parent=1 // pred_region
      _
    $region17: #{tpu_custom_call.1} parent=1 // pred_fallthru
      _
    // Predicated region
    $region18: #{tpu_custom_call.1} parent=1 // pred_check
      _
    $region19: #{tpu_custom_call.1} parent=1 // pred_check_branch
      %33 = sbr.rel (0) target = $region21
    $region20: #{tpu_custom_call.1} parent=1 // pred_region
      _
    $region21: #{tpu_custom_call.1} parent=1 // pred_fallthru
      _
    // Predicated region
    $region22: #{tpu_custom_call.1} parent=1 // pred_check
      _
    $region23: #{tpu_custom_call.1} parent=1 // pred_check_branch
      %35 = sbr.rel (0) target = $region25
    $region24: #{tpu_custom_call.1} parent=1 // pred_region
      _
    $region25: #{tpu_custom_call.1} parent=1 // pred_fallthru
      _
    // Predicated region
    $region26: #{tpu_custom_call.1} parent=1 // pred_check
      _
    $region27: #{tpu_custom_call.1} parent=1 // pred_check_branch
      %37 = sbr.rel (0) target = $region29
    $region28: #{tpu_custom_call.1} parent=1 // pred_region
      _
    $region29: #{tpu_custom_call.1} parent=1 // pred_fallthru
      _
    // Predicated region
    $region30: #{tpu_custom_call.1} parent=1 // pred_check
      _
    $region31: #{tpu_custom_call.1} parent=1 // pred_check_branch
      %39 = sbr.rel (0) target = $region33
    $region32: #{tpu_custom_call.1} parent=1 // pred_region
      %40 = dma.done [#allocation3], 6272
    $region33: #{tpu_custom_call.1} parent=1 // pred_fallthru
      _
    %v42 = vld [vmem:[%s0] sm:$0xff]
    %v43 = vld [vmem:[%s0 + $0x8] sm:$0xff]
    %v44 = vld [vmem:[%s0 + $0x10] sm:$0xff]
    %v45 = vld [vmem:[%s0 + $0x18] sm:$0xff]
    %v46 = vld [vmem:[%s0 + $0x20] sm:$0xff]
    %v47 = vld [vmem:[%s0 + $0x28] sm:$0xff]
    %v48 = vld [vmem:[%s0 + $0x30] sm:$0xff]
    %v49 = vld [vmem:[%s0 + $0x38] sm:$0xff]
    %v50 = vld [vmem:[%s0 + $0x40] sm:$0xff]
    %v51 = vld [vmem:[%s0 + $0x48] sm:$0xff]
    %v52 = vld [vmem:[%s0 + $0x50] sm:$0xff]
    %v53 = vld [vmem:[%s0 + $0x58] sm:$0xff]
    %v54 = vld [vmem:[%s0 + $0x60] sm:$0xff]
    %v55 = vld [vmem:[%s0 + $0x68] sm:$0xff]
    %v56 = vpack.c.bf16 %v49, %v42
    %v57 = vpack.c.bf16 %v50, %v43
    %v58 = vpack.c.bf16 %v51, %v44
    %v59 = vpack.c.bf16 %v52, %v45
    %v60 = vpack.c.bf16 %v53, %v46
    %v61 = vpack.c.bf16 %v54, %v47
    %v62 = vpack.c.bf16 %v55, %v48
    %v63 = vld [vmem:[#allocation2] sm:$0xf]
    %v64 = vld [vmem:[#allocation2 + $0x4] sm:$0xf]
    %v65 = vld [vmem:[#allocation2 + $0x8] sm:$0xf]
    %v66 = vld [vmem:[#allocation2 + $0xc] sm:$0xf]
    %v67 = vld [vmem:[#allocation2 + $0x10] sm:$0xf]
    %v68 = vld [vmem:[#allocation2 + $0x14] sm:$0xf]
    %v69 = vld [vmem:[#allocation2 + $0x18] sm:$0xf]
    %v70 = vld [vmem:[#allocation2 + $0x1c] sm:$0xf]
    %v71 = vld [vmem:[#allocation2 + $0x20] sm:$0xf]
    %v72 = vld [vmem:[#allocation2 + $0x24] sm:$0xf]
    %v73 = vld [vmem:[#allocation2 + $0x28] sm:$0xf]
    %v74 = vld [vmem:[#allocation2 + $0x2c] sm:$0xf]
    %v75 = vld [vmem:[#allocation2 + $0x30] sm:$0xf]
    %v76 = vld [vmem:[#allocation2 + $0x34] sm:$0xf]
    %v77 = vld [vmem:[#allocation2 + $0x38] sm:$0xf]
    %v78 = vld [vmem:[#allocation2 + $0x3c] sm:$0xf]
    %v79 = vld [vmem:[#allocation2 + $0x40] sm:$0xf]
    %v80 = vld [vmem:[#allocation2 + $0x44] sm:$0xf]
    %v81 = vld [vmem:[#allocation2 + $0x48] sm:$0xf]
    %v82 = vld [vmem:[#allocation2 + $0x4c] sm:$0xf]
    %v83 = vld [vmem:[#allocation2 + $0x50] sm:$0xf]
    %v84 = vld [vmem:[#allocation2 + $0x54] sm:$0xf]
    %v85 = vld [vmem:[#allocation2 + $0x58] sm:$0xf]
    %v86 = vld [vmem:[#allocation2 + $0x5c] sm:$0xf]
    %v87 = vld [vmem:[#allocation2 + $0x60] sm:$0xf]
    %v88 = vld [vmem:[#allocation2 + $0x64] sm:$0xf]
    %v89 = vld [vmem:[#allocation2 + $0x68] sm:$0xf]
    %v90 = vld [vmem:[#allocation2 + $0x6c] sm:$0xf]
    %v91 = vld [vmem:[#allocation2 + $0x70] sm:$0xf]
    %v92 = vld [vmem:[#allocation2 + $0x74] sm:$0xf]
    %v93 = vld [vmem:[#allocation2 + $0x78] sm:$0xf]
    %v94 = vld [vmem:[#allocation2 + $0x7c] sm:$0xf]
    %v95 = vld [vmem:[#allocation2 + $0x80] sm:$0xf]
    %v96 = vld [vmem:[#allocation2 + $0x84] sm:$0xf]
    %v97 = vld [vmem:[#allocation2 + $0x88] sm:$0xf]
    %v98 = vld [vmem:[#allocation2 + $0x8c] sm:$0xf]
    %v99 = vld [vmem:[#allocation2 + $0x90] sm:$0xf]
    %v100 = vld [vmem:[#allocation2 + $0x94] sm:$0xf]
    %v101 = vld [vmem:[#allocation2 + $0x98] sm:$0xf]
    %v102 = vld [vmem:[#allocation2 + $0x9c] sm:$0xf]
    %v103 = vld [vmem:[#allocation2 + $0xa0] sm:$0xf]
    %v104 = vld [vmem:[#allocation2 + $0xa4] sm:$0xf]
    %v105 = vld [vmem:[#allocation2 + $0xa8] sm:$0xf]
    %v106 = vld [vmem:[#allocation2 + $0xac] sm:$0xf]
    %v107 = vld [vmem:[#allocation2 + $0xb0] sm:$0xf]
    %v108 = vld [vmem:[#allocation2 + $0xb4] sm:$0xf]
    %v109 = vld [vmem:[#allocation2 + $0xb8] sm:$0xf]
    %v110 = vld [vmem:[#allocation2 + $0xbc] sm:$0xf]
    %v111 = vld [vmem:[#allocation2 + $0xc0] sm:$0xf]
    %v112 = vld [vmem:[#allocation2 + $0xc4] sm:$0xf]
    %v113 = vld [vmem:[#allocation2 + $0xc8] sm:$0xf]
    %v114 = vld [vmem:[#allocation2 + $0xcc] sm:$0xf]
    %v115 = vld [vmem:[#allocation2 + $0xd0] sm:$0xf]
    %v116 = vld [vmem:[#allocation2 + $0xd4] sm:$0xf]
    %v117 = vld [vmem:[#allocation2 + $0xd8] sm:$0xf]
    %v118 = vld [vmem:[#allocation2 + $0xdc] sm:$0xf]
    %v119 = vld [vmem:[#allocation2 + $0xe0] sm:$0xf]
    %v120 = vld [vmem:[#allocation2 + $0xe4] sm:$0xf]
    %v121 = vld [vmem:[#allocation2 + $0xe8] sm:$0xf]
    %v122 = vld [vmem:[#allocation2 + $0xec] sm:$0xf]
    %v123 = vld [vmem:[#allocation2 + $0xf0] sm:$0xf]
    %v124 = vld [vmem:[#allocation2 + $0xf4] sm:$0xf]
    %v125 = vld [vmem:[#allocation2 + $0xf8] sm:$0xf]
    %v126 = vld [vmem:[#allocation2 + $0xfc] sm:$0xf]
    %v127 = vld [vmem:[#allocation2 + $0x100] sm:$0xf]
    %v128 = vld [vmem:[#allocation2 + $0x104] sm:$0xf]
    %v129 = vld [vmem:[#allocation2 + $0x108] sm:$0xf]
    %v130 = vld [vmem:[#allocation2 + $0x10c] sm:$0xf]
    %v131 = vld [vmem:[#allocation2 + $0x110] sm:$0xf]
    %v132 = vld [vmem:[#allocation2 + $0x114] sm:$0xf]
    %v133 = vld [vmem:[#allocation2 + $0x118] sm:$0xf]
    %v134 = vld [vmem:[#allocation2 + $0x11c] sm:$0xf]
    %v135 = vld [vmem:[#allocation2 + $0x120] sm:$0xf]
    %v136 = vld [vmem:[#allocation2 + $0x124] sm:$0xf]
    %v137 = vld [vmem:[#allocation2 + $0x128] sm:$0xf]
    %v138 = vld [vmem:[#allocation2 + $0x12c] sm:$0xf]
    %v139 = vld [vmem:[#allocation2 + $0x130] sm:$0xf]
    %v140 = vld [vmem:[#allocation2 + $0x134] sm:$0xf]
    %v141 = vld [vmem:[#allocation2 + $0x138] sm:$0xf]
    %v142 = vld [vmem:[#allocation2 + $0x13c] sm:$0xf]
    %v143 = vld [vmem:[#allocation2 + $0x140] sm:$0xf]
    %v144 = vld [vmem:[#allocation2 + $0x144] sm:$0xf]
    %v145 = vld [vmem:[#allocation2 + $0x148] sm:$0xf]
    %v146 = vld [vmem:[#allocation2 + $0x14c] sm:$0xf]
    %v147 = vld [vmem:[#allocation2 + $0x150] sm:$0xf]
    %v148 = vld [vmem:[#allocation2 + $0x154] sm:$0xf]
    %v149 = vld [vmem:[#allocation2 + $0x158] sm:$0xf]
    %v150 = vld [vmem:[#allocation2 + $0x15c] sm:$0xf]
    %v151 = vld [vmem:[#allocation2 + $0x160] sm:$0xf]
    %v152 = vld [vmem:[#allocation2 + $0x164] sm:$0xf]
    %v153 = vld [vmem:[#allocation2 + $0x168] sm:$0xf]
    %v154 = vld [vmem:[#allocation2 + $0x16c] sm:$0xf]
    %v155 = vld [vmem:[#allocation2 + $0x170] sm:$0xf]
    %v156 = vld [vmem:[#allocation2 + $0x174] sm:$0xf]
    %v157 = vld [vmem:[#allocation2 + $0x178] sm:$0xf]
    %v158 = vld [vmem:[#allocation2 + $0x17c] sm:$0xf]
    %v159 = vld [vmem:[#allocation2 + $0x180] sm:$0xf]
    %v160 = vld [vmem:[#allocation2 + $0x184] sm:$0xf]
    %v161 = vld [vmem:[%s2] sm:$0x1]
    %v163 = vlaneseq
    %v164 = vshrl.u32 %v163, 7
    %v165 = vsub.s32 0, %v164
    %v166 = vrot.slane %v161, %v165
    %v266 = vunpack.c.l.b16 %v63
    %v267 = vunpack.c.l.b16 %v64
    %v268 = vunpack.c.l.b16 %v65
    %v269 = vunpack.c.l.b16 %v66
    %v270 = vunpack.c.l.b16 %v67
    %v271 = vunpack.c.l.b16 %v68
    %v272 = vunpack.c.l.b16 %v69
    %v273 = vunpack.c.l.b16 %v70
    %v274 = vunpack.c.l.b16 %v71
    %v275 = vunpack.c.l.b16 %v72
    %v276 = vunpack.c.l.b16 %v73
    %v277 = vunpack.c.l.b16 %v74
    %v278 = vunpack.c.l.b16 %v75
    %v279 = vunpack.c.l.b16 %v76
    %v280 = vunpack.c.l.b16 %v77
    %v281 = vunpack.c.l.b16 %v78
    %v282 = vunpack.c.l.b16 %v79
    %v283 = vunpack.c.l.b16 %v80
    %v284 = vunpack.c.l.b16 %v81
    %v285 = vunpack.c.l.b16 %v82
    %v286 = vunpack.c.l.b16 %v83
    %v287 = vunpack.c.l.b16 %v84
    %v288 = vunpack.c.l.b16 %v85
    %v289 = vunpack.c.l.b16 %v86
    %v290 = vunpack.c.l.b16 %v87
    %v291 = vunpack.c.l.b16 %v88
    %v292 = vunpack.c.l.b16 %v89
    %v293 = vunpack.c.l.b16 %v90
    %v294 = vunpack.c.l.b16 %v91
    %v295 = vunpack.c.l.b16 %v92
    %v296 = vunpack.c.l.b16 %v93
    %v297 = vunpack.c.l.b16 %v94
    %v298 = vunpack.c.l.b16 %v95
    %v299 = vunpack.c.l.b16 %v96
    %v300 = vunpack.c.l.b16 %v97
    %v301 = vunpack.c.l.b16 %v98
    %v302 = vunpack.c.l.b16 %v99
    %v303 = vunpack.c.l.b16 %v100
    %v304 = vunpack.c.l.b16 %v101
    %v305 = vunpack.c.l.b16 %v102
    %v306 = vunpack.c.l.b16 %v103
    %v307 = vunpack.c.l.b16 %v104
    %v308 = vunpack.c.l.b16 %v105
    %v309 = vunpack.c.l.b16 %v106
    %v310 = vunpack.c.l.b16 %v107
    %v311 = vunpack.c.l.b16 %v108
    %v312 = vunpack.c.l.b16 %v109
    %v313 = vunpack.c.l.b16 %v110
    %v314 = vunpack.c.l.b16 %v111
    %v315 = vunpack.c.l.b16 %v112
    %v316 = vunpack.c.l.b16 %v113
    %v317 = vunpack.c.l.b16 %v114
    %v318 = vunpack.c.l.b16 %v115
    %v319 = vunpack.c.l.b16 %v116
    %v320 = vunpack.c.l.b16 %v117
    %v321 = vunpack.c.l.b16 %v118
    %v322 = vunpack.c.l.b16 %v119
    %v323 = vunpack.c.l.b16 %v120
    %v324 = vunpack.c.l.b16 %v121
    %v325 = vunpack.c.l.b16 %v122
    %v326 = vunpack.c.l.b16 %v123
    %v327 = vunpack.c.l.b16 %v124
    %v328 = vunpack.c.l.b16 %v125
    %v329 = vunpack.c.l.b16 %v126
    %v330 = vunpack.c.l.b16 %v127
    %v331 = vunpack.c.l.b16 %v128
    %v332 = vunpack.c.l.b16 %v129
    %v333 = vunpack.c.l.b16 %v130
    %v334 = vunpack.c.l.b16 %v131
    %v335 = vunpack.c.l.b16 %v132
    %v336 = vunpack.c.l.b16 %v133
    %v337 = vunpack.c.l.b16 %v134
    %v338 = vunpack.c.l.b16 %v135
    %v339 = vunpack.c.l.b16 %v136
    %v340 = vunpack.c.l.b16 %v137
    %v341 = vunpack.c.l.b16 %v138
    %v342 = vunpack.c.l.b16 %v139
    %v343 = vunpack.c.l.b16 %v140
    %v344 = vunpack.c.l.b16 %v141
    %v345 = vunpack.c.l.b16 %v142
    %v346 = vunpack.c.l.b16 %v143
    %v347 = vunpack.c.l.b16 %v144
    %v348 = vunpack.c.l.b16 %v145
    %v349 = vunpack.c.l.b16 %v146
    %v350 = vunpack.c.l.b16 %v147
    %v351 = vunpack.c.l.b16 %v148
    %v352 = vunpack.c.l.b16 %v149
    %v353 = vunpack.c.l.b16 %v150
    %v354 = vunpack.c.l.b16 %v151
    %v355 = vunpack.c.l.b16 %v152
    %v356 = vunpack.c.l.b16 %v153
    %v357 = vunpack.c.l.b16 %v154
    %v358 = vunpack.c.l.b16 %v155
    %v359 = vunpack.c.l.b16 %v156
    %v360 = vunpack.c.l.b16 %v157
    %v361 = vunpack.c.l.b16 %v158
    %v362 = vunpack.c.l.b16 %v159
    %v363 = vunpack.c.l.b16 %v160
    %v364 = vpack.c.b16 %v267, %v266
    %v365 = vpack.c.b16 %v269, %v268
    %v366 = vpack.c.b16 %v271, %v270
    %v367 = vpack.c.b16 %v273, %v272
    %v368 = vpack.c.b16 %v275, %v274
    %v369 = vpack.c.b16 %v277, %v276
    %v370 = vpack.c.b16 %v279, %v278
    %v371 = vpack.c.b16 %v281, %v280
    %v372 = vpack.c.b16 %v283, %v282
    %v373 = vpack.c.b16 %v285, %v284
    %v374 = vpack.c.b16 %v287, %v286
    %v375 = vpack.c.b16 %v289, %v288
    %v376 = vpack.c.b16 %v291, %v290
    %v377 = vpack.c.b16 %v293, %v292
    %v378 = vpack.c.b16 %v295, %v294
    %v379 = vpack.c.b16 %v297, %v296
    %v380 = vpack.c.b16 %v299, %v298
    %v381 = vpack.c.b16 %v301, %v300
    %v382 = vpack.c.b16 %v303, %v302
    %v383 = vpack.c.b16 %v305, %v304
    %v384 = vpack.c.b16 %v307, %v306
    %v385 = vpack.c.b16 %v309, %v308
    %v386 = vpack.c.b16 %v311, %v310
    %v387 = vpack.c.b16 %v313, %v312
    %v388 = vpack.c.b16 %v315, %v314
    %v389 = vpack.c.b16 %v317, %v316
    %v390 = vpack.c.b16 %v319, %v318
    %v391 = vpack.c.b16 %v321, %v320
    %v392 = vpack.c.b16 %v323, %v322
    %v393 = vpack.c.b16 %v325, %v324
    %v394 = vpack.c.b16 %v327, %v326
    %v395 = vpack.c.b16 %v329, %v328
    %v396 = vpack.c.b16 %v331, %v330
    %v397 = vpack.c.b16 %v333, %v332
    %v398 = vpack.c.b16 %v335, %v334
    %v399 = vpack.c.b16 %v337, %v336
    %v400 = vpack.c.b16 %v339, %v338
    %v401 = vpack.c.b16 %v341, %v340
    %v402 = vpack.c.b16 %v343, %v342
    %v403 = vpack.c.b16 %v345, %v344
    %v404 = vpack.c.b16 %v347, %v346
    %v405 = vpack.c.b16 %v349, %v348
    %v406 = vpack.c.b16 %v351, %v350
    %v407 = vpack.c.b16 %v353, %v352
    %v408 = vpack.c.b16 %v355, %v354
    %v409 = vpack.c.b16 %v357, %v356
    %v410 = vpack.c.b16 %v359, %v358
    %v411 = vpack.c.b16 %v361, %v360
    %v412 = vpack.c.b16 %v363, %v362
    %vm462 = vcmask 130048
    %v464 = vsel %vm462, %v62, 0
    %466 = vmatprep.subr.bf16.mxu0 0
    %467 = vmatpush1.bf16.msra.mxu0 %v371
    %468 = vmatprep.subr.bf16.mxu0 0
    %469 = vmatpush1.bf16.msra.mxu0 %v370
    %470 = vmatprep.subr.bf16.mxu0 0
    %471 = vmatpush1.bf16.msra.mxu0 %v369
    %472 = vmatprep.subr.bf16.mxu0 0
    %473 = vmatpush1.bf16.msra.mxu0 %v368
    %474 = vmatprep.subr.bf16.mxu0 0
    %475 = vmatpush1.bf16.msra.mxu0 %v367
    %476 = vmatprep.subr.bf16.mxu0 0
    %477 = vmatpush1.bf16.msra.mxu0 %v366
    %478 = vmatprep.subr.bf16.mxu0 0
    %479 = vmatpush1.bf16.msra.mxu0 %v365
    %480 = vmatprep.subr.bf16.mxu0 0
    %481 = vmatpush1.bf16.msra.mxu0 %v364
    %482 = vmatprep.subr.bf16.mxu0 0
    %483 = vmatpush2.bf16.msra.mxu0 %v379
    %484 = vmatprep.subr.bf16.mxu0 0
    %485 = vmatpush2.bf16.msra.mxu0 %v378
    %486 = vmatprep.subr.bf16.mxu0 0
    %487 = vmatpush2.bf16.msra.mxu0 %v377
    %488 = vmatprep.subr.bf16.mxu0 0
    %489 = vmatpush2.bf16.msra.mxu0 %v376
    %490 = vmatprep.subr.bf16.mxu0 0
    %491 = vmatpush2.bf16.msra.mxu0 %v375
    %492 = vmatprep.subr.bf16.mxu0 0
    %493 = vmatpush2.bf16.msra.mxu0 %v374
    %494 = vmatprep.subr.bf16.mxu0 0
    %495 = vmatpush2.bf16.msra.mxu0 %v373
    %496 = vmatprep.subr.bf16.mxu0 0
    %497 = vmatpush2.bf16.msra.mxu0 %v372
    %498 = vmatprep.mubr.bf16.mxu0 %v57
    %499 = vmatmul.mubr.bf16.gmra.mxu0 %v56
    %v500 = vpop.f32.mrf.mxu0
    %v501 = vadd.f32 %v166, %v500
    %v502 = vpop.f32.mrf.mxu0
    %v503 = vpop.f32.mrf.mxu0
    %v504 = vadd.f32 %v166, %v503
    %v505 = vpop.f32.mrf.mxu0
    %506 = vdwg.mxu0
    %507 = vmatprep.subr.bf16.mxu0 0
    %508 = vmatpush1.bf16.msra.mxu0 %v387
    %509 = vmatprep.subr.bf16.mxu0 0
    %510 = vmatpush1.bf16.msra.mxu0 %v386
    %511 = vmatprep.subr.bf16.mxu0 0
    %512 = vmatpush1.bf16.msra.mxu0 %v385
    %513 = vmatprep.subr.bf16.mxu0 0
    %514 = vmatpush1.bf16.msra.mxu0 %v384
    %515 = vmatprep.subr.bf16.mxu0 0
    %516 = vmatpush1.bf16.msra.mxu0 %v383
    %517 = vmatprep.subr.bf16.mxu0 0
    %518 = vmatpush1.bf16.msra.mxu0 %v382
    %519 = vmatprep.subr.bf16.mxu0 0
    %520 = vmatpush1.bf16.msra.mxu0 %v381
    %521 = vmatprep.subr.bf16.mxu0 0
    %522 = vmatpush1.bf16.msra.mxu0 %v380
    %523 = vmatprep.subr.bf16.mxu0 0
    %524 = vmatpush2.bf16.msra.mxu0 %v395
    %525 = vmatprep.subr.bf16.mxu0 0
    %526 = vmatpush2.bf16.msra.mxu0 %v394
    %527 = vmatprep.subr.bf16.mxu0 0
    %528 = vmatpush2.bf16.msra.mxu0 %v393
    %529 = vmatprep.subr.bf16.mxu0 0
    %530 = vmatpush2.bf16.msra.mxu0 %v392
    %531 = vmatprep.subr.bf16.mxu0 0
    %532 = vmatpush2.bf16.msra.mxu0 %v391
    %533 = vmatprep.subr.bf16.mxu0 0
    %534 = vmatpush2.bf16.msra.mxu0 %v390
    %535 = vmatprep.subr.bf16.mxu0 0
    %536 = vmatpush2.bf16.msra.mxu0 %v389
    %537 = vmatprep.subr.bf16.mxu0 0
    %538 = vmatpush2.bf16.msra.mxu0 %v388
    %539 = vmatprep.mubr.bf16.mxu0 %v59
    %540 = vmatmul.mubr.bf16.gmra.mxu0 %v58
    %v541 = vpop.f32.mrf.mxu0
    %v542 = vadd.f32 %v501, %v541
    %v543 = vpop.f32.mrf.mxu0
    %v544 = vpop.f32.mrf.mxu0
    %v545 = vadd.f32 %v504, %v544
    %v546 = vpop.f32.mrf.mxu0
    %547 = vdwg.mxu0
    %548 = vmatprep.subr.bf16.mxu0 0
    %549 = vmatpush1.bf16.msra.mxu0 %v403
    %550 = vmatprep.subr.bf16.mxu0 0
    %551 = vmatpush1.bf16.msra.mxu0 %v402
    %552 = vmatprep.subr.bf16.mxu0 0
    %553 = vmatpush1.bf16.msra.mxu0 %v401
    %554 = vmatprep.subr.bf16.mxu0 0
    %555 = vmatpush1.bf16.msra.mxu0 %v400
    %556 = vmatprep.subr.bf16.mxu0 0
    %557 = vmatpush1.bf16.msra.mxu0 %v399
    %558 = vmatprep.subr.bf16.mxu0 0
    %559 = vmatpush1.bf16.msra.mxu0 %v398
    %560 = vmatprep.subr.bf16.mxu0 0
    %561 = vmatpush1.bf16.msra.mxu0 %v397
    %562 = vmatprep.subr.bf16.mxu0 0
    %563 = vmatpush1.bf16.msra.mxu0 %v396
    %564 = vmatprep.subr.bf16.mxu0 0
    %565 = vmatpush2.bf16.msra.mxu0 %v411
    %566 = vmatprep.subr.bf16.mxu0 0
    %567 = vmatpush2.bf16.msra.mxu0 %v410
    %568 = vmatprep.subr.bf16.mxu0 0
    %569 = vmatpush2.bf16.msra.mxu0 %v409
    %570 = vmatprep.subr.bf16.mxu0 0
    %571 = vmatpush2.bf16.msra.mxu0 %v408
    %572 = vmatprep.subr.bf16.mxu0 0
    %573 = vmatpush2.bf16.msra.mxu0 %v407
    %574 = vmatprep.subr.bf16.mxu0 0
    %575 = vmatpush2.bf16.msra.mxu0 %v406
    %576 = vmatprep.subr.bf16.mxu0 0
    %577 = vmatpush2.bf16.msra.mxu0 %v405
    %578 = vmatprep.subr.bf16.mxu0 0
    %579 = vmatpush2.bf16.msra.mxu0 %v404
    %580 = vmatprep.mubr.bf16.mxu0 %v61
    %581 = vmatmul.mubr.bf16.gmra.mxu0 %v60
    %v582 = vpop.f32.mrf.mxu0
    %v583 = vadd.f32 %v542, %v582
    %v584 = vpop.f32.mrf.mxu0
    %v585 = vpop.f32.mrf.mxu0
    %v586 = vadd.f32 %v545, %v585
    %v587 = vpop.f32.mrf.mxu0
    %588 = vdwg.mxu0
    %589 = vmatprep.subr.bf16.mxu0 0
    %590 = vmatpush1.bf16.msra.mxu0 0
    %591 = vmatprep.subr.bf16.mxu0 0
    %592 = vmatpush1.bf16.msra.mxu0 0
    %593 = vmatprep.subr.bf16.mxu0 0
    %594 = vmatpush1.bf16.msra.mxu0 0
    %595 = vmatprep.subr.bf16.mxu0 0
    %596 = vmatpush1.bf16.msra.mxu0 0
    %597 = vmatprep.subr.bf16.mxu0 0
    %598 = vmatpush1.bf16.msra.mxu0 0
    %599 = vmatprep.subr.bf16.mxu0 0
    %600 = vmatpush1.bf16.msra.mxu0 0
    %601 = vmatprep.subr.bf16.mxu0 0
    %602 = vmatpush1.bf16.msra.mxu0 0
    %603 = vmatprep.subr.bf16.mxu0 0
    %604 = vmatpush1.bf16.msra.mxu0 %v412
    %605 = vmatprep.subr.bf16.mxu0 0
    %606 = vmatpush2.bf16.msra.mxu0 0
    %607 = vmatprep.subr.bf16.mxu0 0
    %608 = vmatpush2.bf16.msra.mxu0 0
    %609 = vmatprep.subr.bf16.mxu0 0
    %610 = vmatpush2.bf16.msra.mxu0 0
    %611 = vmatprep.subr.bf16.mxu0 0
    %612 = vmatpush2.bf16.msra.mxu0 0
    %613 = vmatprep.subr.bf16.mxu0 0
    %614 = vmatpush2.bf16.msra.mxu0 0
    %615 = vmatprep.subr.bf16.mxu0 0
    %616 = vmatpush2.bf16.msra.mxu0 0
    %617 = vmatprep.subr.bf16.mxu0 0
    %618 = vmatpush2.bf16.msra.mxu0 0
    %619 = vmatprep.subr.bf16.mxu0 0
    %620 = vmatpush2.bf16.msra.mxu0 0
    %621 = vmatprep.mubr.bf16.mxu0 0
    %622 = vmatmul.mubr.bf16.gmra.mxu0 %v464
    %v623 = vpop.f32.mrf.mxu0
    %v624 = vadd.f32 %v583, %v623
    %v625 = vpop.f32.mrf.mxu0
    %v626 = vpop.f32.mrf.mxu0
    %v627 = vadd.f32 %v586, %v626
    %v628 = vpop.f32.mrf.mxu0
    %629 = vdwg.mxu0
    %v630 = vmax.f32 %v624, 0.0
    %v631 = vmax.f32 %v627, 0.0
    %v632 = vld [vmem:[%s3] sm:$0xff]
    %v633 = vld [vmem:[%s3 + $0x8] sm:$0xff]
    %v634 = vld [vmem:[%s3 + $0x10] sm:$0xff]
    %v635 = vld [vmem:[%s3 + $0x18] sm:$0xff]
    %v636 = vld [vmem:[%s3 + $0x20] sm:$0xff]
    %v637 = vld [vmem:[%s3 + $0x28] sm:$0xff]
    %v638 = vld [vmem:[%s3 + $0x30] sm:$0xff]
    %v639 = vld [vmem:[%s3 + $0x38] sm:$0xff]
    %v640 = vld [vmem:[%s3 + $0x40] sm:$0xff]
    %v641 = vld [vmem:[%s3 + $0x48] sm:$0xff]
    %v642 = vld [vmem:[%s3 + $0x50] sm:$0xff]
    %v643 = vld [vmem:[%s3 + $0x58] sm:$0xff]
    %v644 = vld [vmem:[%s3 + $0x60] sm:$0xff]
    %v645 = vld [vmem:[%s3 + $0x68] sm:$0xff]
    %v646 = vld [vmem:[%s3 + $0x70] sm:$0xff]
    %v647 = vld [vmem:[%s3 + $0x78] sm:$0xff]
    %v648 = vld [vmem:[%s4] sm:$0x1]
    %v650 = vlaneseq
    %v651 = vshrl.u32 %v650, 7
    %v652 = vsub.s32 0, %v651
    %v653 = vrot.slane %v648, %v652
    %655 = vmatprep.subr.mxu0 0.0
    %656 = vmatpush1.msra.mxu0 %v647
    %657 = vmatprep.subr.mxu0 0.0
    %658 = vmatpush1.msra.mxu0 %v646
    %659 = vmatprep.subr.mxu0 0.0
    %660 = vmatpush1.msra.mxu0 %v645
    %661 = vmatprep.subr.mxu0 0.0
    %662 = vmatpush1.msra.mxu0 %v644
    %663 = vmatprep.subr.mxu0 0.0
    %664 = vmatpush1.msra.mxu0 %v643
    %665 = vmatprep.subr.mxu0 0.0
    %666 = vmatpush1.msra.mxu0 %v642
    %667 = vmatprep.subr.mxu0 0.0
    %668 = vmatpush1.msra.mxu0 %v641
    %669 = vmatprep.subr.mxu0 0.0
    %670 = vmatpush1.msra.mxu0 %v640
    %671 = vmatprep.subr.mxu0 0.0
    %672 = vmatpush1.msra.mxu0 %v639
    %673 = vmatprep.subr.mxu0 0.0
    %674 = vmatpush1.msra.mxu0 %v638
    %675 = vmatprep.subr.mxu0 0.0
    %676 = vmatpush1.msra.mxu0 %v637
    %677 = vmatprep.subr.mxu0 0.0
    %678 = vmatpush1.msra.mxu0 %v636
    %679 = vmatprep.subr.mxu0 0.0
    %680 = vmatpush1.msra.mxu0 %v635
    %681 = vmatprep.subr.mxu0 0.0
    %682 = vmatpush1.msra.mxu0 %v634
    %683 = vmatprep.subr.mxu0 0.0
    %684 = vmatpush1.msra.mxu0 %v633
    %685 = vmatprep.subr.mxu0 0.0
    %686 = vmatpush1.msra.mxu0 %v632
    %687 = vmatprep.subr.mxu0 0.0
    %688 = vmatpush2.msra.mxu0 0.0
    %689 = vmatprep.subr.mxu0 0.0
    %690 = vmatpush2.msra.mxu0 0.0
    %691 = vmatprep.subr.mxu0 0.0
    %692 = vmatpush2.msra.mxu0 0.0
    %693 = vmatprep.subr.mxu0 0.0
    %694 = vmatpush2.msra.mxu0 0.0
    %695 = vmatprep.subr.mxu0 0.0
    %696 = vmatpush2.msra.mxu0 0.0
    %697 = vmatprep.subr.mxu0 0.0
    %698 = vmatpush2.msra.mxu0 0.0
    %699 = vmatprep.subr.mxu0 0.0
    %700 = vmatpush2.msra.mxu0 0.0
    %701 = vmatprep.subr.mxu0 0.0
    %702 = vmatpush2.msra.mxu0 0.0
    %703 = vmatprep.subr.mxu0 0.0
    %704 = vmatpush2.msra.mxu0 0.0
    %705 = vmatprep.subr.mxu0 0.0
    %706 = vmatpush2.msra.mxu0 0.0
    %707 = vmatprep.subr.mxu0 0.0
    %708 = vmatpush2.msra.mxu0 0.0
    %709 = vmatprep.subr.mxu0 0.0
    %710 = vmatpush2.msra.mxu0 0.0
    %711 = vmatprep.subr.mxu0 0.0
    %712 = vmatpush2.msra.mxu0 0.0
    %713 = vmatprep.subr.mxu0 0.0
    %714 = vmatpush2.msra.mxu0 0.0
    %715 = vmatprep.subr.mxu0 0.0
    %716 = vmatpush2.msra.mxu0 0.0
    %717 = vmatprep.subr.mxu0 0.0
    %718 = vmatpush2.msra.mxu0 0.0
    %719 = vmatprep.mubr.f32.mxu0 0.0
    %720 = vmatmul.mubr.f32.gmra.mxu0 %v630
    %v721 = vpop.f32.mrf.mxu0
    %v722 = vadd.f32 %v653, %v721
    %v723 = vpop.f32.mrf.mxu0
    %724 = vmatprep.mubr.f32.mxu0 0.0
    %725 = vmatmul.mubr.f32.gmra.mxu0 %v631
    %v726 = vpop.f32.mrf.mxu0
    %v727 = vadd.f32 %v653, %v726
    %v728 = vpop.f32.mrf.mxu0
    %729 = vdwg.mxu0
    %v730 = vmax.f32 %v722, 0.0
    %v731 = vmax.f32 %v727, 0.0
    %v732 = vld [vmem:[%s5] sm:$0xff]
    %v733 = vld [vmem:[%s5 + $0x8] sm:$0xff]
    %v734 = vld [vmem:[%s5 + $0x10] sm:$0xff]
    %v735 = vld [vmem:[%s5 + $0x18] sm:$0xff]
    %v736 = vld [vmem:[%s5 + $0x20] sm:$0xff]
    %v737 = vld [vmem:[%s5 + $0x28] sm:$0xff]
    %v738 = vld [vmem:[%s5 + $0x30] sm:$0xff]
    %v739 = vld [vmem:[%s5 + $0x38] sm:$0xff]
    %v740 = vld [vmem:[%s6] sm:$0x1]
    %v742 = vlaneseq
    %v743 = vshrl.u32 %v742, 7
    %v744 = vsub.s32 0, %v743
    %v745 = vrot.slane %v740, %v744
    %vm747 = vcmask 523264
    %v749 = vsel %vm747, %v730, 0
    %v752 = vsel %vm747, %v731, 0
    %754 = vmatprep.subr.mxu0 0.0
    %755 = vmatpush1.msra.mxu0 0.0
    %756 = vmatprep.subr.mxu0 0.0
    %757 = vmatpush1.msra.mxu0 0.0
    %758 = vmatprep.subr.mxu0 0.0
    %759 = vmatpush1.msra.mxu0 0.0
    %760 = vmatprep.subr.mxu0 0.0
    %761 = vmatpush1.msra.mxu0 0.0
    %762 = vmatprep.subr.mxu0 0.0
    %763 = vmatpush1.msra.mxu0 0.0
    %764 = vmatprep.subr.mxu0 0.0
    %765 = vmatpush1.msra.mxu0 0.0
    %766 = vmatprep.subr.mxu0 0.0
    %767 = vmatpush1.msra.mxu0 0.0
    %768 = vmatprep.subr.mxu0 0.0
    %769 = vmatpush1.msra.mxu0 0.0
    %770 = vmatprep.subr.mxu0 0.0
    %771 = vmatpush1.msra.mxu0 %v739
    %772 = vmatprep.subr.mxu0 0.0
    %773 = vmatpush1.msra.mxu0 %v738
    %774 = vmatprep.subr.mxu0 0.0
    %775 = vmatpush1.msra.mxu0 %v737
    %776 = vmatprep.subr.mxu0 0.0
    %777 = vmatpush1.msra.mxu0 %v736
    %778 = vmatprep.subr.mxu0 0.0
    %779 = vmatpush1.msra.mxu0 %v735
    %780 = vmatprep.subr.mxu0 0.0
    %781 = vmatpush1.msra.mxu0 %v734
    %782 = vmatprep.subr.mxu0 0.0
    %783 = vmatpush1.msra.mxu0 %v733
    %784 = vmatprep.subr.mxu0 0.0
    %785 = vmatpush1.msra.mxu0 %v732
    %786 = vmatprep.subr.mxu0 0.0
    %787 = vmatpush2.msra.mxu0 0.0
    %788 = vmatprep.subr.mxu0 0.0
    %789 = vmatpush2.msra.mxu0 0.0
    %790 = vmatprep.subr.mxu0 0.0
    %791 = vmatpush2.msra.mxu0 0.0
    %792 = vmatprep.subr.mxu0 0.0
    %793 = vmatpush2.msra.mxu0 0.0
    %794 = vmatprep.subr.mxu0 0.0
    %795 = vmatpush2.msra.mxu0 0.0
    %796 = vmatprep.subr.mxu0 0.0
    %797 = vmatpush2.msra.mxu0 0.0
    %798 = vmatprep.subr.mxu0 0.0
    %799 = vmatpush2.msra.mxu0 0.0
    %800 = vmatprep.subr.mxu0 0.0
    %801 = vmatpush2.msra.mxu0 0.0
    %802 = vmatprep.subr.mxu0 0.0
    %803 = vmatpush2.msra.mxu0 0.0
    %804 = vmatprep.subr.mxu0 0.0
    %805 = vmatpush2.msra.mxu0 0.0
    %806 = vmatprep.subr.mxu0 0.0
    %807 = vmatpush2.msra.mxu0 0.0
    %808 = vmatprep.subr.mxu0 0.0
    %809 = vmatpush2.msra.mxu0 0.0
    %810 = vmatprep.subr.mxu0 0.0
    %811 = vmatpush2.msra.mxu0 0.0
    %812 = vmatprep.subr.mxu0 0.0
    %813 = vmatpush2.msra.mxu0 0.0
    %814 = vmatprep.subr.mxu0 0.0
    %815 = vmatpush2.msra.mxu0 0.0
    %816 = vmatprep.subr.mxu0 0.0
    %817 = vmatpush2.msra.mxu0 0.0
    %818 = vmatprep.mubr.f32.mxu0 0.0
    %819 = vmatmul.mubr.f32.gmra.mxu0 %v749
    %v820 = vpop.f32.mrf.mxu0
    %v821 = vadd.f32 %v745, %v820
    %v822 = vpop.f32.mrf.mxu0
    %823 = vmatprep.mubr.f32.mxu0 0.0
    %824 = vmatmul.mubr.f32.gmra.mxu0 %v752
    %v825 = vpop.f32.mrf.mxu0
    %v826 = vadd.f32 %v745, %v825
    %v827 = vpop.f32.mrf.mxu0
    %828 = vdwg.mxu0
    %vm829 = vcmask 80896
    %830 = vst.msk [vmem:[#allocation5] sm:$0xff] %vm829, %v821
    %831 = vst.msk [vmem:[#allocation5 + $0x8] sm:$0xff] %vm829, %v826
    // Predicated region
    $region34: #{tpu_custom_call.1} parent=1 // pred_check
      _
    $region35: #{tpu_custom_call.1} parent=1 // pred_check_branch
      %833 = sbr.rel (0) target = $region37
    $region36: #{tpu_custom_call.1} parent=1 // pred_region
      %s835 = ssub.s32 256, 256
      %836 = vsyncadd [#allocation4], %s835
      %s837 = sshll.u32 [#allocation5], 4
      %s838 = int_to_ptr.vmem [resolvable:$true] %s837
      %843 = dma.vmem_to_hbm [thread:$0]  %s838, 256, %s7, [#allocation4], 128, 128, 8
    $region37: #{tpu_custom_call.1} parent=1 // pred_fallthru
      _
    // Predicated region
    $region38: #{tpu_custom_call.1} parent=1 // pred_check
      _
    $region39: #{tpu_custom_call.1} parent=1 // pred_check_branch
      %845 = sbr.rel (0) target = $region41
    $region40: #{tpu_custom_call.1} parent=1 // pred_region
      %846 = dma.done [#allocation4], 256
    $region41: #{tpu_custom_call.1} parent=1 // pred_fallthru
      _
    %847 = vsyncpa [#allocation3], 1
    %848 = vsyncpa [#allocation4], 1

</llo_original>
